<compile_context>
chip_gen: v7x
topology: tpu7x:2x2x1
jax: 0.10.0
libtpu: 0.0.40
codegen_flags: <defaults>
</compile_context>

<pallas_src>
import jax
import jax.numpy as jnp
from jax import lax
from jax.experimental import pallas as pl
from jax.experimental.pallas import tpu as pltpu


_HS_BLOCK_BUDGET = 4 << 20  # target bytes per hidden-states block (x2 buffers)


def _pick_tiles(B, S, H, itemsize):
    """Batch/seq tile sizes respecting the (8,128) block constraints."""
    tb = 8 if B % 8 == 0 else B          # sublane-aligned batch tile (or full B)
    ts = S                               # fallback: whole sequence in one block
    for cand in (512, 256, 128):         # lane-aligned seq tiles (mask lane dim)
        if S % cand == 0 and tb * cand * H * itemsize <= _HS_BLOCK_BUDGET:
            ts = cand
            break
    else:
        if S % 128 == 0:
            ts = 128
    return tb, ts


def _vmem_limit(est_bytes):
    # Explicit scoped-VMEM budget (safe on v7x's 64 MiB physical VMEM).
    return int(min(max(2 * est_bytes, 8 << 20), 64 << 20))


def _dense_tanh_on(x, w, b2d):
    """tanh(x @ w.T + b) inside a kernel; x is f32, w/b in native dtype."""
    y = lax.dot_general(
        x, w,
        dimension_numbers=(((1,), (1,)), ((), ())),   # contract x[:,k] with w[:,k]
        preferred_element_type=jnp.float32)
    return jnp.tanh(y + b2d.astype(jnp.float32))


def _make_pool_dense_kernel(pooler_type: str, has_mask: bool, seq_len: int):
    is_avg = pooler_type == "avg"

    def kernel(*refs):
        if is_avg and has_mask:
            hs_ref, mask_ref, w_ref, b_ref, out_ref, acc_ref, cnt_ref = refs
        else:
            hs_ref, w_ref, b_ref, out_ref, acc_ref = refs
            mask_ref = cnt_ref = None

        k = pl.program_id(1)

        @pl.when(k == 0)
        def _init():
            if is_avg:
                acc_ref[...] = jnp.zeros_like(acc_ref)
                if has_mask:
                    cnt_ref[...] = jnp.zeros_like(cnt_ref)
            else:  # max
                acc_ref[...] = jnp.full_like(acc_ref, -jnp.inf)

        # Single widen to f32 per tile; accumulate in f32 scratch.
        hs = hs_ref[...].astype(jnp.float32)            # (TB, TS, H)
        if is_avg:
            acc_ref[...] += jnp.sum(hs, axis=1)          # (TB, H)
            if has_mask:
                cnt_ref[...] += jnp.sum(
                    (mask_ref[...] != 0).astype(jnp.float32),
                    axis=1, keepdims=True)               # (TB, 1)
        else:
            acc_ref[...] = jnp.maximum(acc_ref[...], jnp.max(hs, axis=1))

        @pl.when(k == pl.num_programs(1) - 1)
        def _finalize():
            x = acc_ref[...]
            if is_avg:
                if has_mask:
                    # EUP approx reciprocal (off the VPU critical path).
                    x = x * pl.reciprocal(cnt_ref[...], approx=True)
                else:
                    x = x * (1.0 / seq_len)
            out_ref[...] = _dense_tanh_on(x, w_ref[...], b_ref[...]).astype(
                out_ref.dtype)

    return kernel


def _dense_tanh_kernel(x_ref, w_ref, b_ref, out_ref):
    x = x_ref[...].astype(jnp.float32)
    out_ref[...] = _dense_tanh_on(x, w_ref[...], b_ref[...]).astype(out_ref.dtype)


def _dense_tanh_call(x, weight, b2d):
    B, Hin = x.shape
    Hout = weight.shape[0]
    tb = 8 if B % 8 == 0 else B
    itemsize = x.dtype.itemsize
    est = 2 * (tb * Hin * itemsize
               + Hout * Hin * weight.dtype.itemsize
               + Hout * b2d.dtype.itemsize
               + tb * Hout * itemsize)
    return pl.pallas_call(
        _dense_tanh_kernel,
        out_shape=jax.ShapeDtypeStruct((B, Hout), x.dtype),
        grid_spec=pltpu.PrefetchScalarGridSpec(
            num_scalar_prefetch=0,
            grid=(B // tb,),
            in_specs=[pl.BlockSpec((tb, Hin), lambda i: (i, 0)),
                      pl.BlockSpec((Hout, Hin), lambda i: (0, 0)),
                      pl.BlockSpec((1, Hout), lambda i: (0, 0))],
            out_specs=pl.BlockSpec((tb, Hout), lambda i: (i, 0))),
        compiler_params=pltpu.CompilerParams(
            dimension_semantics=("parallel",),
            vmem_limit_bytes=_vmem_limit(est)),
    )(x, weight, b2d)


def moco_bert_pooler(hidden_states, weight, bias, pooling_mask=None,
                     pooler_type="avg"):
    """hidden_states: [B, S, H]; weight: [H_out, H_in] (nn.Linear layout);
    bias: [H_out]; pooling_mask: [B, S] or None."""
    B, S, H = hidden_states.shape
    Hout, Hin = weight.shape
    out_dtype = hidden_states.dtype
    b2d = bias.reshape(1, Hout)                      # native dtype, no upcast

    if pooler_type not in ("avg", "max"):
        # CLS path: read only token 0 from HBM, then dense+tanh.
        return _dense_tanh_call(hidden_states[:, 0, :], weight, b2d)

    # Mask only matters for 'avg' (masked_fill result is discarded otherwise).
    has_mask = (pooler_type == "avg") and (pooling_mask is not None)

    tb, ts = _pick_tiles(B, S, H, hidden_states.dtype.itemsize)
    grid = (B // tb, S // ts)

    kernel = _make_pool_dense_kernel(pooler_type, has_mask, S)

    in_specs = [pl.BlockSpec((tb, ts, H), lambda i, k: (i, k, 0))]
    inputs = [hidden_states]
    if has_mask:
        in_specs.append(pl.BlockSpec((tb, ts), lambda i, k: (i, k)))
        inputs.append(pooling_mask)
    in_specs += [pl.BlockSpec((Hout, Hin), lambda i, k: (0, 0)),
                 pl.BlockSpec((1, Hout), lambda i, k: (0, 0))]
    inputs += [weight, b2d]

    scratch = [pltpu.VMEM((tb, H), jnp.float32)]
    if has_mask:
        scratch.append(pltpu.VMEM((tb, 1), jnp.float32))

    est = (2 * tb * ts * H * hidden_states.dtype.itemsize
           + 2 * Hout * Hin * weight.dtype.itemsize
           + 2 * Hout * bias.dtype.itemsize
           + 2 * tb * Hout * hidden_states.dtype.itemsize
           + tb * (H + 1) * 4)
    if has_mask:
        est += 2 * tb * ts * pooling_mask.dtype.itemsize

    return pl.pallas_call(
        kernel,
        out_shape=jax.ShapeDtypeStruct((B, Hout), out_dtype),
        grid_spec=pltpu.PrefetchScalarGridSpec(
            num_scalar_prefetch=0,
            grid=grid,
            in_specs=in_specs,
            out_specs=pl.BlockSpec((tb, Hout), lambda i, k: (i, 0)),
            scratch_shapes=scratch),
        compiler_params=pltpu.CompilerParams(
            dimension_semantics=("parallel", "arbitrary"),
            vmem_limit_bytes=_vmem_limit(est)),
    )(*inputs)


def _reference(hidden_states, weight, bias, pooling_mask, pooler_type):
    hs = hidden_states.astype(jnp.float32)
    if pooler_type == "avg":
        if pooling_mask is not None:
            x = jnp.sum(hs, axis=1) / jnp.sum(
                (pooling_mask != 0).astype(jnp.float32), axis=-1, keepdims=True)
        else:
            x = jnp.mean(hs, axis=1)
    elif pooler_type == "max":
        # masked_fill result is discarded in the PyTorch reference -> plain max
        x = jnp.max(hs, axis=1)
    else:
        x = hs[:, 0, :]
    return jnp.tanh(x @ weight.T.astype(jnp.float32) + bias.astype(jnp.float32))


if __name__ == "__main__":
    # NOTE: toy shapes; production BERT H (768/1024) keeps the lane dim dense.
    B, S, H = 2, 8, 32
    key = jax.random.PRNGKey(0)
    k_hs, k_w, k_b, k_m = jax.random.split(key, 4)

    hidden_states = jax.random.normal(k_hs, (B, S, H), dtype=jnp.float32)
    weight = (jax.random.normal(k_w, (H, H), dtype=jnp.float32)
              * (1.0 / jnp.sqrt(H)))
    bias = jax.random.normal(k_b, (H,), dtype=jnp.float32) * 0.01
    pooling_mask = (jax.random.uniform(k_m, (B, S)) > 0.3).astype(jnp.float32)
    pooling_mask = pooling_mask.at[:, 0].set(1.0)   # ensure nonzero counts

    cases = [("avg", pooling_mask), ("avg", None),
             ("max", None), ("max", pooling_mask), ("cls", None)]
    for pooler_type, mask in cases:
        out = jax.block_until_ready(
            moco_bert_pooler(hidden_states, weight, bias,
                             pooling_mask=mask, pooler_type=pooler_type))
        ref = _reference(hidden_states, weight, bias, mask, pooler_type)
        # masked-'avg' uses the EUP approximate reciprocal -> slightly looser tol
        tol = 2e-3 if (pooler_type == "avg" and mask is not None) else 1e-5
        if not jnp.allclose(out, ref, atol=tol, rtol=tol):
            raise AssertionError(
                f"mismatch for pooler_type={pooler_type} "
                f"mask={'yes' if mask is not None else 'no'}")

    print("KERNEL_OK")
</pallas_src>

<mosaic_0001>
module attributes {stable_mosaic.version = 11 : i64} {
  func.func @kernel(%arg0: i32, %arg1: i32, %arg2: memref<2x8x32xf32, #tpu.memory_space<vmem>>, %arg3: memref<2x8xf32, #tpu.memory_space<vmem>>, %arg4: memref<32x32xf32, #tpu.memory_space<vmem>>, %arg5: memref<1x32xf32, #tpu.memory_space<vmem>>, %arg6: memref<2x32xf32, #tpu.memory_space<vmem>>, %arg7: memref<2x32xf32, #tpu.memory_space<vmem>>, %arg8: memref<2x1xf32, #tpu.memory_space<vmem>>) attributes {dimension_semantics = [#tpu.dimension_semantics<parallel>, #tpu.dimension_semantics<arbitrary>], iteration_bounds = array<i64: 1, 1>, scalar_prefetch = 0 : i64, scratch_operands = 2 : i64, tpu.core_type = #tpu.core_type<tc>, window_params = [{transform_indices = @transform_0, window_bounds = array<i64: 2, 8, 32>}, {transform_indices = @transform_1, window_bounds = array<i64: 2, 8>}, {pipeline_mode = #tpu.pipeline_mode<synchronous>, transform_indices = @transform_2, window_bounds = array<i64: 32, 32>}, {pipeline_mode = #tpu.pipeline_mode<synchronous>, transform_indices = @transform_3, window_bounds = array<i64: 1, 32>}, {transform_indices = @transform_4, window_bounds = array<i64: 2, 32>}]} {
    %c0_i32 = arith.constant 0 : i32
    %0 = arith.cmpi eq, %arg1, %c0_i32 : i32
    %1 = arith.extui %0 : i1 to i32
    %c0_i32_0 = arith.constant 0 : i32
    %2 = arith.cmpi ne, %1, %c0_i32_0 : i32
    scf.if %2 {
      %cst_17 = arith.constant 0.000000e+00 : f32
      %21 = vector.broadcast %cst_17 : f32 to vector<2x32xf32>
      %c0_18 = arith.constant 0 : index
      %c0_19 = arith.constant 0 : index
      %22 = vector.load %arg7[%c0_18, %c0_19] : memref<2x32xf32, #tpu.memory_space<vmem>>, vector<2x32xf32>
      tpu.vector_store %arg7[%c0_18, %c0_19], %21 {strides = array<i32>} : memref<2x32xf32, #tpu.memory_space<vmem>>, vector<2x32xf32>,
      %cst_20 = arith.constant 0.000000e+00 : f32
      %23 = vector.broadcast %cst_20 : f32 to vector<2x1xf32>
      %c0_21 = arith.constant 0 : index
      %c0_22 = arith.constant 0 : index
      %24 = vector.load %arg8[%c0_21, %c0_22] : memref<2x1xf32, #tpu.memory_space<vmem>>, vector<2x1xf32>
      tpu.vector_store %arg8[%c0_21, %c0_22], %23 {strides = array<i32>} : memref<2x1xf32, #tpu.memory_space<vmem>>, vector<2x1xf32>,
    } else {
    }
    %c0 = arith.constant 0 : index
    %c0_1 = arith.constant 0 : index
    %c0_2 = arith.constant 0 : index
    %3 = vector.load %arg2[%c0, %c0_1, %c0_2] : memref<2x8x32xf32, #tpu.memory_space<vmem>>, vector<2x8x32xf32>
    %c0_3 = arith.constant 0 : index
    %c0_4 = arith.constant 0 : index
    %4 = vector.load %arg7[%c0_3, %c0_4] : memref<2x32xf32, #tpu.memory_space<vmem>>, vector<2x32xf32>
    %cst = arith.constant dense<0.000000e+00> : vector<2x32xf32>
    %5 = vector.multi_reduction <add>, %3, %cst [1] : vector<2x8x32xf32> to vector<2x32xf32>
    %6 = arith.addf %4, %5 : vector<2x32xf32>
    %c0_5 = arith.constant 0 : index
    %c0_6 = arith.constant 0 : index
    %7 = vector.load %arg7[%c0_5, %c0_6] : memref<2x32xf32, #tpu.memory_space<vmem>>, vector<2x32xf32>
    tpu.vector_store %arg7[%c0_5, %c0_6], %6 {strides = array<i32>} : memref<2x32xf32, #tpu.memory_space<vmem>>, vector<2x32xf32>,
    %c0_7 = arith.constant 0 : index
    %c0_8 = arith.constant 0 : index
    %8 = vector.load %arg8[%c0_7, %c0_8] : memref<2x1xf32, #tpu.memory_space<vmem>>, vector<2x1xf32>
    %c0_9 = arith.constant 0 : index
    %c0_10 = arith.constant 0 : index
    %9 = vector.load %arg3[%c0_9, %c0_10] : memref<2x8xf32, #tpu.memory_space<vmem>>, vector<2x8xf32>
    %cst_11 = arith.constant 0.000000e+00 : f32
    %10 = vector.broadcast %cst_11 : f32 to vector<2x8xf32>
    %11 = arith.cmpf one, %9, %10 : vector<2x8xf32>
    %12 = arith.extui %11 : vector<2x8xi1> to vector<2x8xi32>
    %13 = arith.sitofp %12 : vector<2x8xi32> to vector<2x8xf32>
    %cst_12 = arith.constant dense<0.000000e+00> : vector<2xf32>
    %14 = vector.multi_reduction <add>, %13, %cst_12 [1] : vector<2x8xf32> to vector<2xf32>
    %15 = vector.shape_cast %14 : vector<2xf32> to vector<2x1xf32>
    %16 = arith.addf %8, %15 : vector<2x1xf32>
    %c0_13 = arith.constant 0 : index
    %c0_14 = arith.constant 0 : index
    %17 = vector.load %arg8[%c0_13, %c0_14] : memref<2x1xf32, #tpu.memory_space<vmem>>, vector<2x1xf32>
    tpu.vector_store %arg8[%c0_13, %c0_14], %16 {strides = array<i32>} : memref<2x1xf32, #tpu.memory_space<vmem>>, vector<2x1xf32>,
    %c0_i32_15 = arith.constant 0 : i32
    %18 = arith.cmpi eq, %arg1, %c0_i32_15 : i32
    %19 = arith.extui %18 : i1 to i32
    %c0_i32_16 = arith.constant 0 : i32
    %20 = arith.cmpi ne, %19, %c0_i32_16 : i32
    scf.if %20 {
      %c0_17 = arith.constant 0 : index
      %c0_18 = arith.constant 0 : index
      %21 = vector.load %arg7[%c0_17, %c0_18] : memref<2x32xf32, #tpu.memory_space<vmem>>, vector<2x32xf32>
      %c0_19 = arith.constant 0 : index
      %c0_20 = arith.constant 0 : index
      %22 = vector.load %arg8[%c0_19, %c0_20] : memref<2x1xf32, #tpu.memory_space<vmem>>, vector<2x1xf32>
      %23 = tpu.reciprocal %22 {approx = true} : vector<2x1xf32> -> vector<2x1xf32>
      %24 = vector.broadcast %23 : vector<2x1xf32> to vector<2x32xf32>
      %25 = arith.mulf %21, %24 : vector<2x32xf32>
      %c0_21 = arith.constant 0 : index
      %c0_22 = arith.constant 0 : index
      %26 = vector.load %arg4[%c0_21, %c0_22] : memref<32x32xf32, #tpu.memory_space<vmem>>, vector<32x32xf32>
      %c0_23 = arith.constant 0 : index
      %c0_24 = arith.constant 0 : index
      %27 = vector.load %arg5[%c0_23, %c0_24] : memref<1x32xf32, #tpu.memory_space<vmem>>, vector<1x32xf32>
      %cst_25 = arith.constant dense<0.000000e+00> : vector<2x32xf32>
      %28 = tpu.matmul %25, %26, %cst_25 {dimension_numbers = #tpu.dot_dimension_numbers<[1], [1], [0], [0], [0, 0, 1, 0], [], []>} : vector<2x32xf32>, vector<32x32xf32>, vector<2x32xf32> -> vector<2x32xf32>
      %29 = vector.broadcast %27 : vector<1x32xf32> to vector<2x32xf32>
      %30 = arith.addf %28, %29 : vector<2x32xf32>
      %31 = math.tanh %30 : vector<2x32xf32>
      %c0_26 = arith.constant 0 : index
      %c0_27 = arith.constant 0 : index
      %32 = vector.load %arg6[%c0_26, %c0_27] : memref<2x32xf32, #tpu.memory_space<vmem>>, vector<2x32xf32>
      tpu.vector_store %arg6[%c0_26, %c0_27], %31 {strides = array<i32>} : memref<2x32xf32, #tpu.memory_space<vmem>>, vector<2x32xf32>,
    } else {
    }
    return
  }
  func.func @transform_0(%arg0: i32, %arg1: i32) -> (i32, i32, i32) {
    %c0_i32 = arith.constant 0 : i32
    %c0_i32_0 = arith.constant 0 : i32
    return %arg0, %arg1, %c0_i32 : i32, i32, i32
  }
  func.func @transform_1(%arg0: i32, %arg1: i32) -> (i32, i32) {
    %c0_i32 = arith.constant 0 : i32
    return %arg0, %arg1 : i32, i32
  }
  func.func @transform_2(%arg0: i32, %arg1: i32) -> (i32, i32) {
    %c0_i32 = arith.constant 0 : i32
    %c0_i32_0 = arith.constant 0 : i32
    %c0_i32_1 = arith.constant 0 : i32
    return %c0_i32, %c0_i32_0 : i32, i32
  }
  func.func @transform_3(%arg0: i32, %arg1: i32) -> (i32, i32) {
    %c0_i32 = arith.constant 0 : i32
    %c0_i32_0 = arith.constant 0 : i32
    %c0_i32_1 = arith.constant 0 : i32
    return %c0_i32, %c0_i32_0 : i32, i32
  }
  func.func @transform_4(%arg0: i32, %arg1: i32) -> (i32, i32) {
    %c0_i32 = arith.constant 0 : i32
    %c0_i32_0 = arith.constant 0 : i32
    return %arg0, %c0_i32 : i32, i32
  }
}

</mosaic_0001>

<llo_original>
// kernel: tpu_custom_call.1
$region0: #{tpu_custom_call.1}
  #allocation0 [shape = 'u32[]', space=smem, size = 0x4, offset = 0x4, fixed_abs, tag = 'smem constant byte address 0x4 - core index']
  #allocation1 [shape = 'u32[144,128]{1,0:T(1,128)}', space=vmem, size = 0x12000, scoped, tag = 'internal scratch']
  #allocation2 [shape = 'f32[2,32]{1,0:T(2,128)}', space=vmem, size = 0x400, scoped, tag = 'scratch operand']
  #allocation3 [shape = 'f32[2,1]{1,0:T(2,128)}', space=vmem, size = 0x400, scoped, tag = 'scratch operand']
  %s0 = inlined_call_operand.hbm [shape: f32[2,8,32], index: 0, kind: input, shape index: {}]
  %s1 = inlined_call_operand.vmem [shape: f32[2,8], index: 1, kind: input, shape index: {}]
  %s2 = inlined_call_operand.hbm [shape: f32[32,32], index: 2, kind: input, shape index: {}]
  %s3 = inlined_call_operand.vmem [shape: f32[1,32], index: 3, kind: input, shape index: {}]
  %s4 = inlined_call_operand.hbm [shape: f32[2,32], index: 4, kind: output, shape index: {}]
  %s5 = sld [smem:[#allocation0]]
  $region42: #{tpu_custom_call.1} parent=0
    _
  %s7 = ssub.s32 1, %s5
  %s8 = scalar_select 0, %s7, %s5
  $region1: #{tpu_custom_call.1} parent=0
    #allocation4 [shape = 'u8[8192]{0}', space=vmem, size = 0x2000, scoped, tag = 'input window, operand 0, single buffered']
    #allocation5 [shape = 's32[1]{0}', space=sflag, size = 0x4, scoped, tag = 'scoped memory for tpu_custom_call.1']
    #allocation6 [shape = 's32[1]{0}', space=sflag, size = 0x4, scoped, tag = 'scoped memory for tpu_custom_call.1']
    #allocation7 [shape = 'u8[16384]{0}', space=vmem, size = 0x4000, scoped, tag = 'input window, operand 2, single buffered']
    #allocation8 [shape = 's32[1]{0}', space=sflag, size = 0x4, scoped, tag = 'scoped memory for tpu_custom_call.1']
    #allocation9 [shape = 'u8[1024]{0}', space=vmem, size = 0x400, scoped, tag = 'output window, operand 0, single buffered']
    %9 = vsyncpa [#allocation5], 0
    %10 = vsyncpa [#allocation8], 0
    %11 = vsyncpa [#allocation6], 0
    // Predicated region
    $region2: #{tpu_custom_call.1} parent=1 // pred_check
      _
    $region3: #{tpu_custom_call.1} parent=1 // pred_check_branch
      %13 = sbr.rel (0) target = $region5
    $region4: #{tpu_custom_call.1} parent=1 // pred_region
      %s15 = ssub.s32 256, 256
      %16 = vsyncadd [#allocation5], %s15
      %s17 = sshll.u32 [#allocation4], 4
      %s18 = int_to_ptr.vmem [resolvable:$true] %s17
      %23 = dma.hbm_to_vmem [thread:$0]  %s0, 256, %s18, [#allocation5], 128, 128, 8
    $region5: #{tpu_custom_call.1} parent=1 // pred_fallthru
      _
    // Predicated region
    $region6: #{tpu_custom_call.1} parent=1 // pred_check
      _
    $region7: #{tpu_custom_call.1} parent=1 // pred_check_branch
      %25 = sbr.rel (0) target = $region9
    $region8: #{tpu_custom_call.1} parent=1 // pred_region
      _
    $region9: #{tpu_custom_call.1} parent=1 // pred_fallthru
      _
    // Predicated region
    $region10: #{tpu_custom_call.1} parent=1 // pred_check
      _
    $region11: #{tpu_custom_call.1} parent=1 // pred_check_branch
      %27 = sbr.rel (0) target = $region13
    $region12: #{tpu_custom_call.1} parent=1 // pred_region
      %s29 = ssub.s32 512, 512
      %30 = vsyncadd [#allocation8], %s29
      %s31 = sshll.u32 [#allocation7], 4
      %s32 = int_to_ptr.vmem [resolvable:$true] %s31
      %37 = dma.hbm_to_vmem [thread:$0]  %s2, 512, %s32, [#allocation8], 128, 128, 8
    $region13: #{tpu_custom_call.1} parent=1 // pred_fallthru
      _
    // Predicated region
    $region14: #{tpu_custom_call.1} parent=1 // pred_check
      _
    $region15: #{tpu_custom_call.1} parent=1 // pred_check_branch
      %39 = sbr.rel (0) target = $region17
    $region16: #{tpu_custom_call.1} parent=1 // pred_region
      _
    $region17: #{tpu_custom_call.1} parent=1 // pred_fallthru
      _
    // Predicated region
    $region18: #{tpu_custom_call.1} parent=1 // pred_check
      _
    $region19: #{tpu_custom_call.1} parent=1 // pred_check_branch
      %41 = sbr.rel (0) target = $region21
    $region20: #{tpu_custom_call.1} parent=1 // pred_region
      %42 = dma.done [#allocation5], 256
    $region21: #{tpu_custom_call.1} parent=1 // pred_fallthru
      _
    // Predicated region
    $region22: #{tpu_custom_call.1} parent=1 // pred_check
      _
    $region23: #{tpu_custom_call.1} parent=1 // pred_check_branch
      %44 = sbr.rel (0) target = $region25
    $region24: #{tpu_custom_call.1} parent=1 // pred_region
      %45 = dma.done [#allocation8], 512
    $region25: #{tpu_custom_call.1} parent=1 // pred_fallthru
      _
    %p46 = scmp.eq.s32.totalorder 0, 0
    // Predicated region
    $region26: #{tpu_custom_call.1} parent=1 // pred_check
      %p47 = pneg %p46
    $region27: #{tpu_custom_call.1} parent=1 // pred_check_branch
      %49 = sbr.rel (%p47) target = $region29
    $region28: #{tpu_custom_call.1} parent=1 // pred_region
      %vm50 = vcmask 254976
      %51 = vst.msk [vmem:[#allocation2] sm:$0x3] %vm50, 0.0
      %vm52 = vcmask 1024
      %53 = vst.msk [vmem:[#allocation3] sm:$0x3] %vm52, 0.0
    $region29: #{tpu_custom_call.1} parent=1 // pred_fallthru
      _
    %v54 = vld [vmem:[#allocation4] sm:$0xff]
    %v55 = vld [vmem:[#allocation4 + $0x8] sm:$0xff]
    %v56 = vld [vmem:[#allocation2] sm:$0x3]
    %vm57 = vcmask 261120
    %v58 = vsel %vm57, %v54, 0.0
    %v59 = vrot.slane %v58, 4
    %v60 = vadd.f32 %v58, %v59
    %v61 = vrot.slane %v60, 2
    %v62 = vadd.f32 %v60, %v61
    %v63 = vrot.slane %v62, 1
    %v64 = vadd.f32 %v62, %v63
    %v65 = vsel %vm57, %v55, 0.0
    %v66 = vrot.slane %v65, 4
    %v67 = vadd.f32 %v65, %v66
    %v68 = vrot.slane %v67, 2
    %v69 = vadd.f32 %v67, %v68
    %v70 = vrot.slane %v69, 1
    %v71 = vadd.f32 %v69, %v70
    %vm74 = vcmask 1041409
    %v75 = vsel %vm74, %v71, %v64
    %v77 = vadd.f32 %v56, %v75
    %vm78 = vcmask 254976
    %79 = vst.msk [vmem:[#allocation2] sm:$0x3] %vm78, %v77
    %v80 = vld [vmem:[#allocation3] sm:$0x3]
    %v81 = vld [vmem:[%s1] sm:$0x3]
    %vm82 = vcmp.ne.f32.partialorder %v81, 0.0
    %v83 = vsel %vm82, 1, 0
    %v84 = vcvt.s32.f32 %v83
    %vm85 = vcmask 58368
    %v86 = vsel %vm85, %v84, 0.0
    %87 = vadd.xlane.f32.xlu0 %v86
    %v88 = vpop.xlane.xlu0 %87
    %v89 = vadd.f32 %v80, %v88
    %vm90 = vcmask 1024
    %91 = vst.msk [vmem:[#allocation3] sm:$0x3] %vm90, %v89
    // Predicated region
    $region30: #{tpu_custom_call.1} parent=1 // pred_check
      %p92 = pneg %p46
    $region31: #{tpu_custom_call.1} parent=1 // pred_check_branch
      %94 = sbr.rel (%p92) target = $region33
    $region32: #{tpu_custom_call.1} parent=1 // pred_region
      %v95 = vld [vmem:[#allocation2] sm:$0x3]
      %v96 = vld [vmem:[#allocation3] sm:$0x3]
      %v97 = vrcp.pop %v96
      %99 = vset.pattern.permute.xlu0 0
      %100 = vperm.xlu0 %99, %v97
      %v101 = vpop.permute.xlu0 %100
      %v103 = vmul.f32 %v95, %v101
      %v104 = vld [vmem:[#allocation7] sm:$0xff]
      %v105 = vld [vmem:[#allocation7 + $0x8] sm:$0xff]
      %v106 = vld [vmem:[#allocation7 + $0x10] sm:$0xff]
      %v107 = vld [vmem:[#allocation7 + $0x18] sm:$0xff]
      %v108 = vld [vmem:[%s3] sm:$0x1]
      %v110 = vlaneseq
      %v111 = vshrl.u32 %v110, 7
      %v112 = vsub.s32 0, %v111
      %v113 = vrot.slane %v108, %v112
      %v116 = vsel %vm57, %v103, 0
      %v119 = vsel %vm57, %v104, 0
      %v122 = vsel %vm57, %v105, 0
      %v125 = vsel %vm57, %v106, 0
      %v128 = vsel %vm57, %v107, 0
      %130 = vmatprep.subr.mxu0 0.0
      %131 = vmatpush1.xpose.msra.mxu0 %v119
      %132 = vmatprep.subr.mxu0 0.0
      %133 = vmatpush1.xpose.msra.mxu0 %v122
      %134 = vmatprep.subr.mxu0 0.0
      %135 = vmatpush1.xpose.msra.mxu0 %v125
      %136 = vmatprep.subr.mxu0 0.0
      %137 = vmatpush1.xpose.msra.mxu0 %v128
      %138 = vmatprep.subr.mxu0 0.0
      %139 = vmatpush1.xpose.msra.mxu0 0.0
      %140 = vmatprep.subr.mxu0 0.0
      %141 = vmatpush1.xpose.msra.mxu0 0.0
      %142 = vmatprep.subr.mxu0 0.0
      %143 = vmatpush1.xpose.msra.mxu0 0.0
      %144 = vmatprep.subr.mxu0 0.0
      %145 = vmatpush1.xpose.msra.mxu0 0.0
      %146 = vmatprep.subr.mxu0 0.0
      %147 = vmatpush1.xpose.msra.mxu0 0.0
      %148 = vmatprep.subr.mxu0 0.0
      %149 = vmatpush1.xpose.msra.mxu0 0.0
      %150 = vmatprep.subr.mxu0 0.0
      %151 = vmatpush1.xpose.msra.mxu0 0.0
      %152 = vmatprep.subr.mxu0 0.0
      %153 = vmatpush1.xpose.msra.mxu0 0.0
      %154 = vmatprep.subr.mxu0 0.0
      %155 = vmatpush1.xpose.msra.mxu0 0.0
      %156 = vmatprep.subr.mxu0 0.0
      %157 = vmatpush1.xpose.msra.mxu0 0.0
      %158 = vmatprep.subr.mxu0 0.0
      %159 = vmatpush1.xpose.msra.mxu0 0.0
      %160 = vmatprep.subr.mxu0 0.0
      %161 = vmatpush1.xpose.msra.mxu0 0.0
      %162 = vmatprep.subr.mxu0 0.0
      %163 = vmatpush1.xpose.msra.mxu0 0.0
      %164 = vmatprep.subr.mxu0 0.0
      %165 = vmatpush1.xpose.msra.mxu0 0.0
      %166 = vmatprep.subr.mxu0 0.0
      %167 = vmatpush1.xpose.msra.mxu0 0.0
      %168 = vmatprep.subr.mxu0 0.0
      %169 = vmatpush1.xpose.msra.mxu0 0.0
      %170 = vmatprep.subr.mxu0 0.0
      %171 = vmatpush1.xpose.msra.mxu0 0.0
      %172 = vmatprep.subr.mxu0 0.0
      %173 = vmatpush1.xpose.msra.mxu0 0.0
      %174 = vmatprep.subr.mxu0 0.0
      %175 = vmatpush1.xpose.msra.mxu0 0.0
      %176 = vmatprep.subr.mxu0 0.0
      %177 = vmatpush1.xpose.msra.mxu0 0.0
      %178 = vmatprep.subr.mxu0 0.0
      %179 = vmatpush1.xpose.msra.mxu0 0.0
      %180 = vmatprep.subr.mxu0 0.0
      %181 = vmatpush1.xpose.msra.mxu0 0.0
      %182 = vmatprep.subr.mxu0 0.0
      %183 = vmatpush1.xpose.msra.mxu0 0.0
      %184 = vmatprep.subr.mxu0 0.0
      %185 = vmatpush1.xpose.msra.mxu0 0.0
      %186 = vmatprep.subr.mxu0 0.0
      %187 = vmatpush1.xpose.msra.mxu0 0.0
      %188 = vmatprep.subr.mxu0 0.0
      %189 = vmatpush1.xpose.msra.mxu0 0.0
      %190 = vmatprep.subr.mxu0 0.0
      %191 = vmatpush1.xpose.msra.mxu0 0.0
      %192 = vmatprep.subr.mxu0 0.0
      %193 = vmatpush1.xpose.msra.mxu0 0.0
      %194 = vmatprep.mubr.f32.mxu0 0.0
      %195 = vmatmul.mubr.f32.gmra.mrb[0].mxu0 %v116
      %v196 = vpop.f32.mrb[0].mxu0
      %v197 = vadd.f32 %v113, %v196
      %v198 = vpop.f32.mrb[0].mxu0
      %199 = vdwg.mxu0
      %v200 = vtanh.pop %v197
      %201 = vst.msk [vmem:[#allocation9] sm:$0x3] %vm78, %v200
    $region33: #{tpu_custom_call.1} parent=1 // pred_fallthru
      _
    // Predicated region
    $region34: #{tpu_custom_call.1} parent=1 // pred_check
      _
    $region35: #{tpu_custom_call.1} parent=1 // pred_check_branch
      %203 = sbr.rel (0) target = $region37
    $region36: #{tpu_custom_call.1} parent=1 // pred_region
      %s205 = ssub.s32 32, 32
      %206 = vsyncadd [#allocation6], %s205
      %s208 = sshll.u32 [#allocation9], 4
      %s209 = int_to_ptr.vmem [resolvable:$true] %s208
      %211 = dma.vmem_to_hbm [thread:$0]  %s209, 32, %s4, [#allocation6]
    $region37: #{tpu_custom_call.1} parent=1 // pred_fallthru
      _
    // Predicated region
    $region38: #{tpu_custom_call.1} parent=1 // pred_check
      _
    $region39: #{tpu_custom_call.1} parent=1 // pred_check_branch
      %213 = sbr.rel (0) target = $region41
    $region40: #{tpu_custom_call.1} parent=1 // pred_region
      %214 = dma.done [#allocation6], 32
    $region41: #{tpu_custom_call.1} parent=1 // pred_fallthru
      _
    %215 = vsyncpa [#allocation5], 1
    %216 = vsyncpa [#allocation8], 1
    %217 = vsyncpa [#allocation6], 1

</llo_original>
